<compile_context>
chip_gen: v7x
topology: tpu7x:2x2x1
jax: 0.10.0
libtpu: 0.0.40
codegen_flags: <defaults>
</compile_context>

<pallas_src>
import functools

import jax
import jax.numpy as jnp
from jax.experimental import pallas as pl
from jax.experimental.pallas import tpu as pltpu


def _round_up(x, m):
    return ((x + m - 1) // m) * m


# ---------------------------------------------------------------------------
# Pass 1: per-row inverse norms + cosine diagonal  (O(N*D))
# ---------------------------------------------------------------------------
def _row_stats_kernel(im_ref, s_ref, inv_im_ref, inv_s_ref, diag_ref, *, eps):
    im = im_ref[...].astype(jnp.float32)                                   # [T, Dp]
    s = s_ref[...].astype(jnp.float32)                                     # [T, Dp]
    inv_im = jax.lax.rsqrt(jnp.sum(im * im, axis=1, keepdims=True) + eps)  # [T, 1]
    inv_s = jax.lax.rsqrt(jnp.sum(s * s, axis=1, keepdims=True) + eps)     # [T, 1]
    inv_im_ref[...] = inv_im
    inv_s_ref[...] = inv_s
    diag_ref[...] = jnp.sum(im * s, axis=1, keepdims=True) * inv_im * inv_s


# ---------------------------------------------------------------------------
# Pass 2: tiled hinge-loss over the [N, N] score matrix, per-row-tile outputs
# ---------------------------------------------------------------------------
def _loss_kernel(im_ref, s_ref, inv_im_ref, inv_s_ref, diag_r_ref, diag_c_ref,
                 psum_ref, *opt_out, margin, direction, max_violation, tile,
                 n_valid, n_padded):
    colmax_ref = opt_out[0] if opt_out else None
    i = pl.program_id(0)            # row tile (im rows)   -- "parallel"
    j = pl.program_id(1)            # column tile (s rows) -- reduction, innermost

    @pl.when(j == 0)
    def _init():
        psum_ref[...] = jnp.zeros_like(psum_ref)

    # Raw MXU matmul on native-dtype tiles, contracting the feature dim of BOTH
    # operands (no transpose of s), f32 accumulation.
    raw = jax.lax.dot_general(
        im_ref[...], s_ref[...],
        dimension_numbers=(((1,), (1,)), ((), ())),
        preferred_element_type=jnp.float32)                  # [T, T]
    # Cosine scores via post-matmul scaling by the inverse norms.
    scores = raw * inv_im_ref[...] * inv_s_ref[...]          # [T,1] * [1,T] broadcast

    d1 = diag_r_ref[...]                                     # [T, 1]  diag[row]
    d2 = diag_c_ref[...]                                     # [1, T]  diag[col]

    rows = i * tile + jax.lax.broadcasted_iota(jnp.int32, (tile, tile), 0)
    cols = j * tile + jax.lax.broadcasted_iota(jnp.int32, (tile, tile), 1)
    keep = rows != cols                                      # mask the diagonal
    if n_padded != n_valid:                                  # mask zero-padded rows/cols
        keep = jnp.logical_and(
            keep, jnp.logical_and(rows < n_valid, cols < n_valid))

    zero = jnp.float32(0.0)
    m = jnp.float32(margin)
    acc = None

    if direction in ("i2t", "bidir"):
        cost_s = jnp.where(keep, jnp.maximum(m + scores - d1, zero), zero)
        if max_violation:
            # psum holds the running per-row max across j (hinge costs are >= 0).
            psum_ref[...] = jnp.maximum(
                psum_ref[...], jnp.max(cost_s, axis=1, keepdims=True))
        else:
            acc = jnp.sum(cost_s, axis=1, keepdims=True)

    if direction in ("t2i", "bidir"):
        cost_im = jnp.where(keep, jnp.maximum(m + scores - d2, zero), zero)
        if max_violation:
            # Per-(i, j)-tile column max; cross-row-tile max happens in the wrapper.
            cmax = jnp.max(cost_im, axis=0, keepdims=True)   # [1, T]
            colmax_ref[...] = jnp.broadcast_to(cmax, colmax_ref.shape)  # [8, T]
        else:
            part = jnp.sum(cost_im, axis=1, keepdims=True)
            acc = part if acc is None else acc + part

    if acc is not None:
        psum_ref[...] += acc


# ---------------------------------------------------------------------------
# Wrapper
# ---------------------------------------------------------------------------
def contrastive_loss(s, im, *, margin=0.0, max_violation=False,
                     cost_style="sum", direction="bidir", tile=128, eps=1e-12):
    """s, im: [N, D] arrays. Returns scalar float32 loss (forward of ContrastiveLoss)."""
    assert s.ndim == 2 and s.shape == im.shape
    assert cost_style in ("sum", "mean")
    assert direction in ("i2t", "t2i", "bidir")
    n, d = s.shape

    # Tile / padding: feature dim padded to a multiple of 128 (lane-dense MXU
    # contraction); batch dim padded to a multiple of the tile.
    if n <= 128:
        t = _round_up(max(n, 8), 8)
    else:
        assert tile % 128 == 0, "tile must be a multiple of 128 for N > 128"
        t = tile
    n_pad = _round_up(n, t)
    d_pad = _round_up(max(d, 128), 128)

    s_p = jnp.pad(s, ((0, n_pad - n), (0, d_pad - d)))
    im_p = jnp.pad(im, ((0, n_pad - n), (0, d_pad - d)))
    nt = n_pad // t

    # ---- pass 1: per-row stats --------------------------------------------
    inv_im, inv_s, diag = pl.pallas_call(
        functools.partial(_row_stats_kernel, eps=float(eps)),
        grid=(nt,),
        in_specs=[pl.BlockSpec((t, d_pad), lambda i: (i, 0)),
                  pl.BlockSpec((t, d_pad), lambda i: (i, 0))],
        out_specs=[pl.BlockSpec((t, 1), lambda i: (i, 0)),
                   pl.BlockSpec((t, 1), lambda i: (i, 0)),
                   pl.BlockSpec((t, 1), lambda i: (i, 0))],
        out_shape=[jax.ShapeDtypeStruct((n_pad, 1), jnp.float32),
                   jax.ShapeDtypeStruct((n_pad, 1), jnp.float32),
                   jax.ShapeDtypeStruct((n_pad, 1), jnp.float32)],
        compiler_params=pltpu.CompilerParams(dimension_semantics=("parallel",)),
    )(im_p, s_p)

    # Lane-major copies for the column direction (tiny N-element reshapes).
    inv_s_col = inv_s.reshape(1, n_pad)
    diag_col = diag.reshape(1, n_pad)

    # ---- pass 2: tiled hinge accumulation ----------------------------------
    need_colmax = bool(max_violation) and direction in ("t2i", "bidir")

    kernel = functools.partial(
        _loss_kernel, margin=float(margin), direction=direction,
        max_violation=bool(max_violation), tile=t, n_valid=n, n_padded=n_pad)

    if need_colmax:
        out_shape = [jax.ShapeDtypeStruct((n_pad, 1), jnp.float32),
                     jax.ShapeDtypeStruct((8 * nt, n_pad), jnp.float32)]
        out_specs = [pl.BlockSpec((t, 1), lambda i, j: (i, 0)),
                     pl.BlockSpec((8, t), lambda i, j: (i, j))]
    else:
        out_shape = jax.ShapeDtypeStruct((n_pad, 1), jnp.float32)
        out_specs = pl.BlockSpec((t, 1), lambda i, j: (i, 0))

    itemsize = jnp.dtype(im_p.dtype).itemsize
    cost = pl.CostEstimate(
        flops=int(2 * n_pad * n_pad * d_pad + 8 * n_pad * n_pad),
        transcendentals=0,
        bytes_accessed=int((nt + 1) * n_pad * d_pad * itemsize
                           + 16 * n_pad + 4 * n_pad + 32 * nt * n_pad))

    res = pl.pallas_call(
        kernel,
        grid=(nt, nt),
        in_specs=[
            pl.BlockSpec((t, d_pad), lambda i, j: (i, 0)),   # im row tile (resident over j)
            pl.BlockSpec((t, d_pad), lambda i, j: (j, 0)),   # s col tile
            pl.BlockSpec((t, 1), lambda i, j: (i, 0)),       # 1/||im_row||
            pl.BlockSpec((1, t), lambda i, j: (0, j)),       # 1/||s_col||  (lane-major)
            pl.BlockSpec((t, 1), lambda i, j: (i, 0)),       # diag[row]
            pl.BlockSpec((1, t), lambda i, j: (0, j)),       # diag[col]    (lane-major)
        ],
        out_specs=out_specs,
        out_shape=out_shape,
        compiler_params=pltpu.CompilerParams(
            dimension_semantics=("parallel", "arbitrary")),
        cost_estimate=cost,
    )(im_p, s_p, inv_im, inv_s_col, diag, diag_col)

    if need_colmax:
        psum, colmax = res
        # Global per-column max over all row tiles (replicated across 8 sublanes),
        # padded columns are exactly 0 so summing all of them is safe.
        total = jnp.sum(psum) + jnp.sum(jnp.max(colmax, axis=0))
    else:
        total = jnp.sum(res)

    if cost_style == "mean":
        denom = float(n) if max_violation else float(n) * float(n)
        total = total * jnp.float32(1.0 / denom)
    return total.astype(jnp.float32)


# ---------------------------------------------------------------------------
# Pure-JAX reference (mirrors the PyTorch module)
# ---------------------------------------------------------------------------
def _reference_loss(s, im, *, margin=0.0, max_violation=False,
                    cost_style="sum", direction="bidir"):
    s32, im32 = s.astype(jnp.float32), im.astype(jnp.float32)
    sn = s32 / jnp.sqrt(jnp.sum(s32 * s32, axis=1, keepdims=True))
    imn = im32 / jnp.sqrt(jnp.sum(im32 * im32, axis=1, keepdims=True))
    scores = imn @ sn.T
    n = scores.shape[0]
    diag = jnp.diagonal(scores).reshape(n, 1)
    eye = jnp.eye(n, dtype=bool)
    cost_s = None
    cost_im = None
    if direction in ("i2t", "bidir"):
        cost_s = jnp.where(eye, 0.0, jnp.maximum(margin + scores - diag, 0.0))
    if direction in ("t2i", "bidir"):
        cost_im = jnp.where(eye, 0.0, jnp.maximum(margin + scores - diag.T, 0.0))
    if max_violation:
        if cost_s is not None:
            cost_s = jnp.max(cost_s, axis=1)
        if cost_im is not None:
            cost_im = jnp.max(cost_im, axis=0)
    if cost_s is None:
        cost_s = jnp.zeros((1,), jnp.float32)
    if cost_im is None:
        cost_im = jnp.zeros((1,), jnp.float32)
    if cost_style == "sum":
        return jnp.sum(cost_s) + jnp.sum(cost_im)
    return jnp.mean(cost_s) + jnp.mean(cost_im)


if __name__ == "__main__":
    base_key = jax.random.PRNGKey(0)

    configs = [
        # (N,   D,  margin, max_violation, cost_style, direction)
        (256, 128, 0.2, False, "sum", "bidir"),   # 2x2 grid, diag + off-diag tiles
        (256, 128, 0.2, True, "sum", "bidir"),    # row-max output + col-max output
        (256, 128, 0.1, True, "sum", "i2t"),      # row-max only (no colmax output)
        (200, 160, 0.2, True, "mean", "t2i"),     # col-max only + padded N/D + mean
        (100, 96, 0.1, False, "mean", "i2t"),     # padded N and D + mean
        (64, 48, 0.3, False, "sum", "t2i"),       # single-tile, padded D
    ]

    result = None
    for (n, d, margin, mv, style, direction) in configs:
        ka, kb = jax.random.split(jax.random.fold_in(base_key, n * 1000 + d), 2)
        s = jax.random.normal(ka, (n, d), dtype=jnp.float32)
        im = jax.random.normal(kb, (n, d), dtype=jnp.float32)

        got = contrastive_loss(s, im, margin=margin, max_violation=mv,
                               cost_style=style, direction=direction)
        got = jax.block_until_ready(got)
        want = _reference_loss(s, im, margin=margin, max_violation=mv,
                               cost_style=style, direction=direction)
        assert jnp.allclose(got, want, rtol=2e-4, atol=2e-3), (
            (n, d, margin, mv, style, direction), float(got), float(want))
        result = got

    assert result is not None
    print("KERNEL_OK")
</pallas_src>

<mosaic_0001>
module attributes {stable_mosaic.version = 11 : i64} {
  func.func @_row_stats_kernel(%arg0: i32, %arg1: memref<128x128xf32, #tpu.memory_space<vmem>>, %arg2: memref<128x128xf32, #tpu.memory_space<vmem>>, %arg3: memref<128x1xf32, #tpu.memory_space<vmem>>, %arg4: memref<128x1xf32, #tpu.memory_space<vmem>>, %arg5: memref<128x1xf32, #tpu.memory_space<vmem>>) attributes {dimension_semantics = [#tpu.dimension_semantics<parallel>], iteration_bounds = array<i64: 2>, scalar_prefetch = 0 : i64, scratch_operands = 0 : i64, tpu.core_type = #tpu.core_type<tc>, window_params = [{transform_indices = @transform_0, window_bounds = array<i64: 128, 128>}, {transform_indices = @transform_1, window_bounds = array<i64: 128, 128>}, {transform_indices = @transform_2, window_bounds = array<i64: 128, 1>}, {transform_indices = @transform_3, window_bounds = array<i64: 128, 1>}, {transform_indices = @transform_4, window_bounds = array<i64: 128, 1>}]} {
    %c0 = arith.constant 0 : index
    %c0_0 = arith.constant 0 : index
    %0 = vector.load %arg1[%c0, %c0_0] : memref<128x128xf32, #tpu.memory_space<vmem>>, vector<128x128xf32>
    %c0_1 = arith.constant 0 : index
    %c0_2 = arith.constant 0 : index
    %1 = vector.load %arg2[%c0_1, %c0_2] : memref<128x128xf32, #tpu.memory_space<vmem>>, vector<128x128xf32>
    %2 = arith.mulf %0, %0 : vector<128x128xf32>
    %cst = arith.constant dense<0.000000e+00> : vector<128xf32>
    %3 = vector.multi_reduction <add>, %2, %cst [1] : vector<128x128xf32> to vector<128xf32>
    %4 = vector.shape_cast %3 : vector<128xf32> to vector<128x1xf32>
    %cst_3 = arith.constant 9.99999996E-13 : f32
    %5 = vector.broadcast %cst_3 : f32 to vector<128x1xf32>
    %6 = arith.addf %4, %5 : vector<128x1xf32>
    %7 = math.rsqrt %6 : vector<128x1xf32>
    %8 = arith.mulf %1, %1 : vector<128x128xf32>
    %cst_4 = arith.constant dense<0.000000e+00> : vector<128xf32>
    %9 = vector.multi_reduction <add>, %8, %cst_4 [1] : vector<128x128xf32> to vector<128xf32>
    %10 = vector.shape_cast %9 : vector<128xf32> to vector<128x1xf32>
    %cst_5 = arith.constant 9.99999996E-13 : f32
    %11 = vector.broadcast %cst_5 : f32 to vector<128x1xf32>
    %12 = arith.addf %10, %11 : vector<128x1xf32>
    %13 = math.rsqrt %12 : vector<128x1xf32>
    %c0_6 = arith.constant 0 : index
    %c0_7 = arith.constant 0 : index
    %14 = vector.load %arg3[%c0_6, %c0_7] : memref<128x1xf32, #tpu.memory_space<vmem>>, vector<128x1xf32>
    tpu.vector_store %arg3[%c0_6, %c0_7], %7 {strides = array<i32>} : memref<128x1xf32, #tpu.memory_space<vmem>>, vector<128x1xf32>,
    %c0_8 = arith.constant 0 : index
    %c0_9 = arith.constant 0 : index
    %15 = vector.load %arg4[%c0_8, %c0_9] : memref<128x1xf32, #tpu.memory_space<vmem>>, vector<128x1xf32>
    tpu.vector_store %arg4[%c0_8, %c0_9], %13 {strides = array<i32>} : memref<128x1xf32, #tpu.memory_space<vmem>>, vector<128x1xf32>,
    %16 = arith.mulf %0, %1 : vector<128x128xf32>
    %cst_10 = arith.constant dense<0.000000e+00> : vector<128xf32>
    %17 = vector.multi_reduction <add>, %16, %cst_10 [1] : vector<128x128xf32> to vector<128xf32>
    %18 = vector.shape_cast %17 : vector<128xf32> to vector<128x1xf32>
    %19 = arith.mulf %18, %7 : vector<128x1xf32>
    %20 = arith.mulf %19, %13 : vector<128x1xf32>
    %c0_11 = arith.constant 0 : index
    %c0_12 = arith.constant 0 : index
    %21 = vector.load %arg5[%c0_11, %c0_12] : memref<128x1xf32, #tpu.memory_space<vmem>>, vector<128x1xf32>
    tpu.vector_store %arg5[%c0_11, %c0_12], %20 {strides = array<i32>} : memref<128x1xf32, #tpu.memory_space<vmem>>, vector<128x1xf32>,
    return
  }
  func.func @transform_0(%arg0: i32) -> (i32, i32) {
    %c0_i32 = arith.constant 0 : i32
    %c0_i32_0 = arith.constant 0 : i32
    return %arg0, %c0_i32 : i32, i32
  }
  func.func @transform_1(%arg0: i32) -> (i32, i32) {
    %c0_i32 = arith.constant 0 : i32
    %c0_i32_0 = arith.constant 0 : i32
    return %arg0, %c0_i32 : i32, i32
  }
  func.func @transform_2(%arg0: i32) -> (i32, i32) {
    %c0_i32 = arith.constant 0 : i32
    %c0_i32_0 = arith.constant 0 : i32
    return %arg0, %c0_i32 : i32, i32
  }
  func.func @transform_3(%arg0: i32) -> (i32, i32) {
    %c0_i32 = arith.constant 0 : i32
    %c0_i32_0 = arith.constant 0 : i32
    return %arg0, %c0_i32 : i32, i32
  }
  func.func @transform_4(%arg0: i32) -> (i32, i32) {
    %c0_i32 = arith.constant 0 : i32
    %c0_i32_0 = arith.constant 0 : i32
    return %arg0, %c0_i32 : i32, i32
  }
}

</mosaic_0001>

<llo_original>
// kernel: tpu_custom_call.1
$region0: #{tpu_custom_call.1}
  #allocation0 [shape = 'u32[]', space=smem, size = 0x4, offset = 0x4, fixed_abs, tag = 'smem constant byte address 0x4 - core index']
  #allocation1 [shape = 'u32[144,128]{1,0:T(1,128)}', space=vmem, size = 0x12000, scoped, tag = 'internal scratch']
  %s0 = inlined_call_operand.hbm [shape: f32[256,128], index: 0, kind: input, shape index: {}]
  %s1 = inlined_call_operand.hbm [shape: f32[256,128], index: 1, kind: input, shape index: {}]
  %s2 = inlined_call_operand.vmem [shape: f32[256,1], index: 2, kind: output, shape index: {0}]
  %s3 = inlined_call_operand.vmem [shape: f32[256,1], index: 3, kind: output, shape index: {1}]
  %s4 = inlined_call_operand.vmem [shape: f32[256,1], index: 4, kind: output, shape index: {2}]
  %5 = xla_tuple %s2, %s3, %s4
  %s6 = sld [smem:[#allocation0]]
  $region65: #{tpu_custom_call.1} parent=0
    _
  %s8 = ssub.s32 1, %s6
  %s9 = scalar_select 0, %s8, %s6
  $region1: #{tpu_custom_call.1} parent=0
    #allocation2 [shape = 'u8[131072]{0}', space=vmem, size = 0x20000, scoped, tag = 'input window, operand 0']
    #allocation3 [shape = 's32[2]{0}', space=sflag, size = 0x8, scoped, tag = 'scoped memory for tpu_custom_call.1']
    #allocation4 [shape = 'u8[131072]{0}', space=vmem, size = 0x20000, scoped, tag = 'input window, operand 1']
    #allocation5 [shape = 's32[2]{0}', space=sflag, size = 0x8, scoped, tag = 'scoped memory for tpu_custom_call.1']
    %10 = vsyncpa [#allocation3], 0
    %s11 = scalar_lea.sflag [#allocation3], 1
    %12 = vsyncpa %s11, 0
    %13 = vsyncpa [#allocation5], 0
    %s14 = scalar_lea.sflag [#allocation5], 1
    %15 = vsyncpa %s14, 0
    loop: start=0, step=1, limit=4
    $region2: #{tpu_custom_call.1} parent=1 // loop_pre_header
      _
    $region3: #{tpu_custom_call.1} parent=1 // loop_header
      %s17 = sphi 0, %s21
      %p18 = scmp.ge.s32.totalorder %s17, 4
      %s27 = sphi 0, %s29
      %s30 = sphi 0, %s27
      %s31 = sphi 0, %s30
      %s47 = sphi 0, %s31
      %s53 = sphi 0, %s55
      %s56 = sphi 0, %s53
      %s57 = sphi 0, %s56
      %s73 = sphi 0, %s57
      %s79 = sphi 0, %s81
      %s82 = sphi 0, %s79
      %s83 = sphi 0, %s82
      %s99 = sphi 0, %s83
      %s105 = sphi 0, %s107
      %s108 = sphi 0, %s105
      %s109 = sphi 0, %s108
      %s125 = sphi 0, %s109
      %s131 = sphi 0, %s133
      %s134 = sphi 0, %s131
      %s135 = sphi 0, %s134
      %s151 = sphi 0, %s135
    $region4: #{tpu_custom_call.1} parent=1 // loop_header_branch
      %20 = sbr.rel (%p18) target = $region8
    $region5: #{tpu_custom_call.1} parent=1 // loop_body
      %s22 = ssub.s32 %s17, 1
      %s23 = ssub.s32 %s17, 2
      %s24 = sadd.s32 %s17, 1
      %s25 = ssub.s32 %s17, %s24
      %p26 = scmp.eq.s32.totalorder %s25, 0
      %s28 = sadd.s32 %s27, 1
      %s29 = scalar_select %p26, %s27, %s28
      %p32 = pneg %p26
      %p33 = scmp.eq.s32.totalorder %s17, 1
      %p34 = por %p32, %p33
      %p35 = scmp.ne.s32.totalorder %s27, %s30
      %p36 = scmp.eq.s32.totalorder %s17, 0
      %p37 = por %p35, %p36
      %p38 = scmp.ne.s32.totalorder %s27, %s30
      %p39 = scmp.eq.s32.totalorder %s22, 1
      %p40 = por %p38, %p39
      %p41 = scmp.ne.s32.totalorder %s30, %s31
      %p42 = scmp.eq.s32.totalorder %s22, 0
      %p43 = por %p41, %p42
      %p44 = scmp.ne.s32.totalorder %s30, %s31
      %p45 = scmp.eq.s32.totalorder %s23, 1
      %p46 = por %p44, %p45
      %p48 = scmp.ne.s32.totalorder %s31, %s47
      %p49 = scmp.eq.s32.totalorder %s23, 0
      %p50 = por %p48, %p49
      %s51 = ssub.s32 %s17, %s24
      %p52 = scmp.eq.s32.totalorder %s51, 0
      %s54 = sadd.s32 %s53, 1
      %s55 = scalar_select %p52, %s53, %s54
      %p58 = pneg %p52
      %p59 = scmp.eq.s32.totalorder %s17, 1
      %p60 = por %p58, %p59
      %p61 = scmp.ne.s32.totalorder %s53, %s56
      %p62 = scmp.eq.s32.totalorder %s17, 0
      %p63 = por %p61, %p62
      %p64 = scmp.ne.s32.totalorder %s53, %s56
      %p65 = scmp.eq.s32.totalorder %s22, 1
      %p66 = por %p64, %p65
      %p67 = scmp.ne.s32.totalorder %s56, %s57
      %p68 = scmp.eq.s32.totalorder %s22, 0
      %p69 = por %p67, %p68
      %p70 = scmp.ne.s32.totalorder %s56, %s57
      %p71 = scmp.eq.s32.totalorder %s23, 1
      %p72 = por %p70, %p71
      %p74 = scmp.ne.s32.totalorder %s57, %s73
      %p75 = scmp.eq.s32.totalorder %s23, 0
      %p76 = por %p74, %p75
      %s77 = ssub.s32 %s17, %s24
      %p78 = scmp.eq.s32.totalorder %s77, 0
      %s80 = sadd.s32 %s79, 1
      %s81 = scalar_select %p78, %s79, %s80
      %p84 = pneg %p78
      %p85 = scmp.eq.s32.totalorder %s17, 1
      %p86 = por %p84, %p85
      %p87 = scmp.ne.s32.totalorder %s79, %s82
      %p88 = scmp.eq.s32.totalorder %s17, 0
      %p89 = por %p87, %p88
      %p90 = scmp.ne.s32.totalorder %s79, %s82
      %p91 = scmp.eq.s32.totalorder %s22, 1
      %p92 = por %p90, %p91
      %p93 = scmp.ne.s32.totalorder %s82, %s83
      %p94 = scmp.eq.s32.totalorder %s22, 0
      %p95 = por %p93, %p94
      %p96 = scmp.ne.s32.totalorder %s82, %s83
      %p97 = scmp.eq.s32.totalorder %s23, 1
      %p98 = por %p96, %p97
      %p100 = scmp.ne.s32.totalorder %s83, %s99
      %p101 = scmp.eq.s32.totalorder %s23, 0
      %p102 = por %p100, %p101
      %s103 = ssub.s32 %s17, %s24
      %p104 = scmp.eq.s32.totalorder %s103, 0
      %s106 = sadd.s32 %s105, 1
      %s107 = scalar_select %p104, %s105, %s106
      %p110 = pneg %p104
      %p111 = scmp.eq.s32.totalorder %s17, 1
      %p112 = por %p110, %p111
      %p113 = scmp.ne.s32.totalorder %s105, %s108
      %p114 = scmp.eq.s32.totalorder %s17, 0
      %p115 = por %p113, %p114
      %p116 = scmp.ne.s32.totalorder %s105, %s108
      %p117 = scmp.eq.s32.totalorder %s22, 1
      %p118 = por %p116, %p117
      %p119 = scmp.ne.s32.totalorder %s108, %s109
      %p120 = scmp.eq.s32.totalorder %s22, 0
      %p121 = por %p119, %p120
      %p122 = scmp.ne.s32.totalorder %s108, %s109
      %p123 = scmp.eq.s32.totalorder %s23, 1
      %p124 = por %p122, %p123
      %p126 = scmp.ne.s32.totalorder %s109, %s125
      %p127 = scmp.eq.s32.totalorder %s23, 0
      %p128 = por %p126, %p127
      %s129 = ssub.s32 %s17, %s24
      %p130 = scmp.eq.s32.totalorder %s129, 0
      %s132 = sadd.s32 %s131, 1
      %s133 = scalar_select %p130, %s131, %s132
      %p136 = pneg %p130
      %p137 = scmp.eq.s32.totalorder %s17, 1
      %p138 = por %p136, %p137
      %p139 = scmp.ne.s32.totalorder %s131, %s134
      %p140 = scmp.eq.s32.totalorder %s17, 0
      %p141 = por %p139, %p140
      %p142 = scmp.ne.s32.totalorder %s131, %s134
      %p143 = scmp.eq.s32.totalorder %s22, 1
      %p144 = por %p142, %p143
      %p145 = scmp.ne.s32.totalorder %s134, %s135
      %p146 = scmp.eq.s32.totalorder %s22, 0
      %p147 = por %p145, %p146
      %p148 = scmp.ne.s32.totalorder %s134, %s135
      %p149 = scmp.eq.s32.totalorder %s23, 1
      %p150 = por %p148, %p149
      %p152 = scmp.ne.s32.totalorder %s135, %s151
      %p153 = scmp.eq.s32.totalorder %s23, 0
      %p154 = por %p152, %p153
      %p155 = scmp.le.s32.totalorder 1, %s17
      %p156 = scmp.lt.s32.totalorder %s17, 3
      %p157 = pnand %p155, %p156
      %p158 = pneg %p157
      // Predicated region
      $region9: #{tpu_custom_call.1} parent=5 // pred_check
        _
      $region10: #{tpu_custom_call.1} parent=5 // pred_check_branch
        %160 = sbr.rel (%p157) target = $region12
      $region11: #{tpu_custom_call.1} parent=5 // pred_region
        %s161 = ssub.s32 %s17, 1
      $region12: #{tpu_custom_call.1} parent=5 // pred_fallthru
        _
      %p162 = scmp.lt.s32.totalorder %s17, 2
      // Predicated region
      $region13: #{tpu_custom_call.1} parent=5 // pred_check
        %p163 = pneg %p162
      $region14: #{tpu_custom_call.1} parent=5 // pred_check_branch
        %165 = sbr.rel (%p163) target = $region16
      $region15: #{tpu_custom_call.1} parent=5 // pred_region
        // Predicated region
        $region17: #{tpu_custom_call.1} parent=15 // pred_check
          %p166 = pneg %p37
        $region18: #{tpu_custom_call.1} parent=15 // pred_check_branch
          %168 = sbr.rel (%p166) target = $region20
        $region19: #{tpu_custom_call.1} parent=15 // pred_region
          %s169 = sand.u32 %s27, 1
          %s170 = scalar_lea.sflag [#allocation3], %s169
          %s171 = sand.u32 %s27, 1
          %s172 = smul.addr %s171, 128
          %s173 = scalar_lea.vmem [#allocation2], %s172
          %s174 = smul.u32 16, %s17
          %s176 = ssub.s32 2048, 2048
          %177 = vsyncadd %s170, %s176
          %s178 = smul.addr %s174, 128
          %s179 = scalar_lea.hbm %s0, %s178
          %s180 = sshll.u32 %s173, 4
          %s181 = int_to_ptr.vmem [resolvable:$true] %s180
          %186 = dma.hbm_to_vmem [thread:$0]  %s179, 2048, %s181, %s170, 128, 128, 8
        $region20: #{tpu_custom_call.1} parent=15 // pred_fallthru
          _
        // Predicated region
        $region21: #{tpu_custom_call.1} parent=15 // pred_check
          %p187 = pneg %p63
        $region22: #{tpu_custom_call.1} parent=15 // pred_check_branch
          %189 = sbr.rel (%p187) target = $region24
        $region23: #{tpu_custom_call.1} parent=15 // pred_region
          %s190 = sand.u32 %s53, 1
          %s191 = scalar_lea.sflag [#allocation5], %s190
          %s192 = sand.u32 %s53, 1
          %s193 = smul.addr %s192, 128
          %s194 = scalar_lea.vmem [#allocation4], %s193
          %s195 = smul.u32 16, %s17
          %s197 = ssub.s32 2048, 2048
          %198 = vsyncadd %s191, %s197
          %s199 = smul.addr %s195, 128
          %s200 = scalar_lea.hbm %s1, %s199
          %s201 = sshll.u32 %s194, 4
          %s202 = int_to_ptr.vmem [resolvable:$true] %s201
          %207 = dma.hbm_to_vmem [thread:$0]  %s200, 2048, %s202, %s191, 128, 128, 8
        $region24: #{tpu_custom_call.1} parent=15 // pred_fallthru
          _
      $region16: #{tpu_custom_call.1} parent=5 // pred_fallthru
        _
      %p208 = scmp.le.s32.totalorder 1, %s17
      %p209 = scmp.lt.s32.totalorder %s17, 3
      %p210 = pnand %p208, %p209
      %p211 = pneg %p210
      // Predicated region
      $region25: #{tpu_custom_call.1} parent=5 // pred_check
        _
      $region26: #{tpu_custom_call.1} parent=5 // pred_check_branch
        %213 = sbr.rel (%p210) target = $region28
      $region27: #{tpu_custom_call.1} parent=5 // pred_region
        %s214 = ssub.s32 %s17, 1
        %s215 = sand.u32 %s30, 1
        %s216 = scalar_lea.sflag [#allocation3], %s215
        %s217 = sand.u32 %s30, 1
        %s218 = smul.addr %s217, 128
        %s219 = scalar_lea.vmem [#allocation2], %s218
        // Predicated region
        $region29: #{tpu_custom_call.1} parent=27 // pred_check
          %p220 = pneg %p43
        $region30: #{tpu_custom_call.1} parent=27 // pred_check_branch
          %222 = sbr.rel (%p220) target = $region32
        $region31: #{tpu_custom_call.1} parent=27 // pred_region
          %223 = dma.done %s216, 2048
        $region32: #{tpu_custom_call.1} parent=27 // pred_fallthru
          _
        %s224 = sand.u32 %s56, 1
        %s225 = scalar_lea.sflag [#allocation5], %s224
        %s226 = sand.u32 %s56, 1
        %s227 = smul.addr %s226, 128
        %s228 = scalar_lea.vmem [#allocation4], %s227
        // Predicated region
        $region33: #{tpu_custom_call.1} parent=27 // pred_check
          %p229 = pneg %p69
        $region34: #{tpu_custom_call.1} parent=27 // pred_check_branch
          %231 = sbr.rel (%p229) target = $region36
        $region35: #{tpu_custom_call.1} parent=27 // pred_region
          %232 = dma.done %s225, 2048
        $region36: #{tpu_custom_call.1} parent=27 // pred_fallthru
          _
        %s233 = sand.u32 %s30, 1
        %s234 = scalar_lea.sflag [#allocation3], %s233
        %s235 = sand.u32 %s30, 1
        %s236 = smul.addr %s235, 128
        %s237 = scalar_lea.vmem [#allocation2], %s236
        %p238 = pneg %p43
        %p239 = pneg %p40
        %s240 = sand.u32 %s56, 1
        %s241 = scalar_lea.sflag [#allocation5], %s240
        %s242 = sand.u32 %s56, 1
        %s243 = smul.addr %s242, 128
        %s244 = scalar_lea.vmem [#allocation4], %s243
        %p245 = pneg %p69
        %p246 = pneg %p66
        %p247 = pneg %p95
        %p248 = pneg %p92
        %s249 = smul.u32 16, %s22
        %p250 = scmp.lt.s32.totalorder %s249, 31
        %s251 = scalar_select %p250, %s249, 31
        %s252 = smul.addr %s251, 8
        %s253 = scalar_lea.vmem %s2, %s252
        %p254 = pneg %p121
        %p255 = pneg %p118
        %s256 = smul.u32 16, %s22
        %p257 = scmp.lt.s32.totalorder %s256, 31
        %s258 = scalar_select %p257, %s256, 31
        %s259 = smul.addr %s258, 8
        %s260 = scalar_lea.vmem %s3, %s259
        %p261 = pneg %p147
        %p262 = pneg %p144
        %s263 = smul.u32 16, %s22
        %p264 = scmp.lt.s32.totalorder %s263, 31
        %s265 = scalar_select %p264, %s263, 31
        %s266 = smul.addr %s265, 8
        %s267 = scalar_lea.vmem %s4, %s266
        %s268 = smul.u32 16, %s22
        %s269 = smul.u32 16, %s22
        %s270 = smul.u32 16, %s22
        %p271 = scmp.lt.s32.totalorder %s270, 31
        %s272 = scalar_select %p271, %s270, 31
        %s273 = smul.addr %s272, 8
        %s274 = scalar_lea.vmem %s2, %s273
        %s275 = smul.u32 16, %s22
        %s276 = smul.u32 16, %s22
        %p277 = scmp.lt.s32.totalorder %s276, 31
        %s278 = scalar_select %p277, %s276, 31
        %s279 = smul.addr %s278, 8
        %s280 = scalar_lea.vmem %s3, %s279
        %s281 = smul.u32 16, %s22
        %s282 = smul.u32 16, %s22
        %p283 = scmp.lt.s32.totalorder %s282, 31
        %s284 = scalar_select %p283, %s282, 31
        %s285 = smul.addr %s284, 8
        %s286 = scalar_lea.vmem %s4, %s285
        %s287 = smul.u32 16, %s22
        %v288 = vld [vmem:[%s219] sm:$0xff]
        %v289 = vld [vmem:[%s219 + $0x8] sm:$0xff]
        %v290 = vld [vmem:[%s219 + $0x10] sm:$0xff]
        %v291 = vld [vmem:[%s219 + $0x18] sm:$0xff]
        %v292 = vld [vmem:[%s219 + $0x20] sm:$0xff]
        %v293 = vld [vmem:[%s219 + $0x28] sm:$0xff]
        %v294 = vld [vmem:[%s219 + $0x30] sm:$0xff]
        %v295 = vld [vmem:[%s219 + $0x38] sm:$0xff]
        %v296 = vld [vmem:[%s219 + $0x40] sm:$0xff]
        %v297 = vld [vmem:[%s219 + $0x48] sm:$0xff]
        %v298 = vld [vmem:[%s219 + $0x50] sm:$0xff]
        %v299 = vld [vmem:[%s219 + $0x58] sm:$0xff]
        %v300 = vld [vmem:[%s219 + $0x60] sm:$0xff]
        %v301 = vld [vmem:[%s219 + $0x68] sm:$0xff]
        %v302 = vld [vmem:[%s219 + $0x70] sm:$0xff]
        %v303 = vld [vmem:[%s219 + $0x78] sm:$0xff]
        %v304 = vld [vmem:[%s228] sm:$0xff]
        %v305 = vld [vmem:[%s228 + $0x8] sm:$0xff]
        %v306 = vld [vmem:[%s228 + $0x10] sm:$0xff]
        %v307 = vld [vmem:[%s228 + $0x18] sm:$0xff]
        %v308 = vld [vmem:[%s228 + $0x20] sm:$0xff]
        %v309 = vld [vmem:[%s228 + $0x28] sm:$0xff]
        %v310 = vld [vmem:[%s228 + $0x30] sm:$0xff]
        %v311 = vld [vmem:[%s228 + $0x38] sm:$0xff]
        %v312 = vld [vmem:[%s228 + $0x40] sm:$0xff]
        %v313 = vld [vmem:[%s228 + $0x48] sm:$0xff]
        %v314 = vld [vmem:[%s228 + $0x50] sm:$0xff]
        %v315 = vld [vmem:[%s228 + $0x58] sm:$0xff]
        %v316 = vld [vmem:[%s228 + $0x60] sm:$0xff]
        %v317 = vld [vmem:[%s228 + $0x68] sm:$0xff]
        %v318 = vld [vmem:[%s228 + $0x70] sm:$0xff]
        %v319 = vld [vmem:[%s228 + $0x78] sm:$0xff]
        %v320 = vmul.f32 %v288, %v288
        %v321 = vmul.f32 %v289, %v289
        %v322 = vmul.f32 %v290, %v290
        %v323 = vmul.f32 %v291, %v291
        %v324 = vmul.f32 %v292, %v292
        %v325 = vmul.f32 %v293, %v293
        %v326 = vmul.f32 %v294, %v294
        %v327 = vmul.f32 %v295, %v295
        %v328 = vmul.f32 %v296, %v296
        %v329 = vmul.f32 %v297, %v297
        %v330 = vmul.f32 %v298, %v298
        %v331 = vmul.f32 %v299, %v299
        %v332 = vmul.f32 %v300, %v300
        %v333 = vmul.f32 %v301, %v301
        %v334 = vmul.f32 %v302, %v302
        %v335 = vmul.f32 %v303, %v303
        %336 = vadd.xlane.f32.xlu0 %v320
        %v337 = vpop.xlane.xlu0 %336
        %338 = vadd.xlane.f32.xlu0 %v321
        %v339 = vpop.xlane.xlu0 %338
        %340 = vadd.xlane.f32.xlu0 %v322
        %v341 = vpop.xlane.xlu0 %340
        %342 = vadd.xlane.f32.xlu0 %v323
        %v343 = vpop.xlane.xlu0 %342
        %344 = vadd.xlane.f32.xlu0 %v324
        %v345 = vpop.xlane.xlu0 %344
        %346 = vadd.xlane.f32.xlu0 %v325
        %v347 = vpop.xlane.xlu0 %346
        %348 = vadd.xlane.f32.xlu0 %v326
        %v349 = vpop.xlane.xlu0 %348
        %350 = vadd.xlane.f32.xlu0 %v327
        %v351 = vpop.xlane.xlu0 %350
        %352 = vadd.xlane.f32.xlu0 %v328
        %v353 = vpop.xlane.xlu0 %352
        %354 = vadd.xlane.f32.xlu0 %v329
        %v355 = vpop.xlane.xlu0 %354
        %356 = vadd.xlane.f32.xlu0 %v330
        %v357 = vpop.xlane.xlu0 %356
        %358 = vadd.xlane.f32.xlu0 %v331
        %v359 = vpop.xlane.xlu0 %358
        %360 = vadd.xlane.f32.xlu0 %v332
        %v361 = vpop.xlane.xlu0 %360
        %362 = vadd.xlane.f32.xlu0 %v333
        %v363 = vpop.xlane.xlu0 %362
        %364 = vadd.xlane.f32.xlu0 %v334
        %v365 = vpop.xlane.xlu0 %364
        %366 = vadd.xlane.f32.xlu0 %v335
        %v367 = vpop.xlane.xlu0 %366
        %v368 = vadd.f32 %v337, 1e-12
        %v369 = vadd.f32 %v339, 1e-12
        %v370 = vadd.f32 %v341, 1e-12
        %v371 = vadd.f32 %v343, 1e-12
        %v372 = vadd.f32 %v345, 1e-12
        %v373 = vadd.f32 %v347, 1e-12
        %v374 = vadd.f32 %v349, 1e-12
        %v375 = vadd.f32 %v351, 1e-12
        %v376 = vadd.f32 %v353, 1e-12
        %v377 = vadd.f32 %v355, 1e-12
        %v378 = vadd.f32 %v357, 1e-12
        %v379 = vadd.f32 %v359, 1e-12
        %v380 = vadd.f32 %v361, 1e-12
        %v381 = vadd.f32 %v363, 1e-12
        %v382 = vadd.f32 %v365, 1e-12
        %v383 = vadd.f32 %v367, 1e-12
        %v384 = vrsqrt.pop %v368
        %v385 = vrsqrt.pop %v369
        %v386 = vrsqrt.pop %v370
        %v387 = vrsqrt.pop %v371
        %v388 = vrsqrt.pop %v372
        %v389 = vrsqrt.pop %v373
        %v390 = vrsqrt.pop %v374
        %v391 = vrsqrt.pop %v375
        %v392 = vrsqrt.pop %v376
        %v393 = vrsqrt.pop %v377
        %v394 = vrsqrt.pop %v378
        %v395 = vrsqrt.pop %v379
        %v396 = vrsqrt.pop %v380
        %v397 = vrsqrt.pop %v381
        %v398 = vrsqrt.pop %v382
        %v399 = vrsqrt.pop %v383
        %v400 = vmul.f32 %v304, %v304
        %v401 = vmul.f32 %v305, %v305
        %v402 = vmul.f32 %v306, %v306
        %v403 = vmul.f32 %v307, %v307
        %v404 = vmul.f32 %v308, %v308
        %v405 = vmul.f32 %v309, %v309
        %v406 = vmul.f32 %v310, %v310
        %v407 = vmul.f32 %v311, %v311
        %v408 = vmul.f32 %v312, %v312
        %v409 = vmul.f32 %v313, %v313
        %v410 = vmul.f32 %v314, %v314
        %v411 = vmul.f32 %v315, %v315
        %v412 = vmul.f32 %v316, %v316
        %v413 = vmul.f32 %v317, %v317
        %v414 = vmul.f32 %v318, %v318
        %v415 = vmul.f32 %v319, %v319
        %416 = vadd.xlane.f32.xlu0 %v400
        %v417 = vpop.xlane.xlu0 %416
        %418 = vadd.xlane.f32.xlu0 %v401
        %v419 = vpop.xlane.xlu0 %418
        %420 = vadd.xlane.f32.xlu0 %v402
        %v421 = vpop.xlane.xlu0 %420
        %422 = vadd.xlane.f32.xlu0 %v403
        %v423 = vpop.xlane.xlu0 %422
        %424 = vadd.xlane.f32.xlu0 %v404
        %v425 = vpop.xlane.xlu0 %424
        %426 = vadd.xlane.f32.xlu0 %v405
        %v427 = vpop.xlane.xlu0 %426
        %428 = vadd.xlane.f32.xlu0 %v406
        %v429 = vpop.xlane.xlu0 %428
        %430 = vadd.xlane.f32.xlu0 %v407
        %v431 = vpop.xlane.xlu0 %430
        %432 = vadd.xlane.f32.xlu0 %v408
        %v433 = vpop.xlane.xlu0 %432
        %434 = vadd.xlane.f32.xlu0 %v409
        %v435 = vpop.xlane.xlu0 %434
        %436 = vadd.xlane.f32.xlu0 %v410
        %v437 = vpop.xlane.xlu0 %436
        %438 = vadd.xlane.f32.xlu0 %v411
        %v439 = vpop.xlane.xlu0 %438
        %440 = vadd.xlane.f32.xlu0 %v412
        %v441 = vpop.xlane.xlu0 %440
        %442 = vadd.xlane.f32.xlu0 %v413
        %v443 = vpop.xlane.xlu0 %442
        %444 = vadd.xlane.f32.xlu0 %v414
        %v445 = vpop.xlane.xlu0 %444
        %446 = vadd.xlane.f32.xlu0 %v415
        %v447 = vpop.xlane.xlu0 %446
        %v448 = vadd.f32 %v417, 1e-12
        %v449 = vadd.f32 %v419, 1e-12
        %v450 = vadd.f32 %v421, 1e-12
        %v451 = vadd.f32 %v423, 1e-12
        %v452 = vadd.f32 %v425, 1e-12
        %v453 = vadd.f32 %v427, 1e-12
        %v454 = vadd.f32 %v429, 1e-12
        %v455 = vadd.f32 %v431, 1e-12
        %v456 = vadd.f32 %v433, 1e-12
        %v457 = vadd.f32 %v435, 1e-12
        %v458 = vadd.f32 %v437, 1e-12
        %v459 = vadd.f32 %v439, 1e-12
        %v460 = vadd.f32 %v441, 1e-12
        %v461 = vadd.f32 %v443, 1e-12
        %v462 = vadd.f32 %v445, 1e-12
        %v463 = vadd.f32 %v447, 1e-12
        %v464 = vrsqrt.pop %v448
        %v465 = vrsqrt.pop %v449
        %v466 = vrsqrt.pop %v450
        %v467 = vrsqrt.pop %v451
        %v468 = vrsqrt.pop %v452
        %v469 = vrsqrt.pop %v453
        %v470 = vrsqrt.pop %v454
        %v471 = vrsqrt.pop %v455
        %v472 = vrsqrt.pop %v456
        %v473 = vrsqrt.pop %v457
        %v474 = vrsqrt.pop %v458
        %v475 = vrsqrt.pop %v459
        %v476 = vrsqrt.pop %v460
        %v477 = vrsqrt.pop %v461
        %v478 = vrsqrt.pop %v462
        %v479 = vrsqrt.pop %v463
        %vm480 = vcmask 7168
        %481 = vst.msk [vmem:[%s274] sm:$0xff] %vm480, %v384
        %482 = vst.msk [vmem:[%s274 + $0x8] sm:$0xff] %vm480, %v385
        %483 = vst.msk [vmem:[%s274 + $0x10] sm:$0xff] %vm480, %v386
        %484 = vst.msk [vmem:[%s274 + $0x18] sm:$0xff] %vm480, %v387
        %485 = vst.msk [vmem:[%s274 + $0x20] sm:$0xff] %vm480, %v388
        %486 = vst.msk [vmem:[%s274 + $0x28] sm:$0xff] %vm480, %v389
        %487 = vst.msk [vmem:[%s274 + $0x30] sm:$0xff] %vm480, %v390
        %488 = vst.msk [vmem:[%s274 + $0x38] sm:$0xff] %vm480, %v391
        %489 = vst.msk [vmem:[%s274 + $0x40] sm:$0xff] %vm480, %v392
        %490 = vst.msk [vmem:[%s274 + $0x48] sm:$0xff] %vm480, %v393
        %491 = vst.msk [vmem:[%s274 + $0x50] sm:$0xff] %vm480, %v394
        %492 = vst.msk [vmem:[%s274 + $0x58] sm:$0xff] %vm480, %v395
        %493 = vst.msk [vmem:[%s274 + $0x60] sm:$0xff] %vm480, %v396
        %494 = vst.msk [vmem:[%s274 + $0x68] sm:$0xff] %vm480, %v397
        %495 = vst.msk [vmem:[%s274 + $0x70] sm:$0xff] %vm480, %v398
        %496 = vst.msk [vmem:[%s274 + $0x78] sm:$0xff] %vm480, %v399
        %497 = vst.msk [vmem:[%s280] sm:$0xff] %vm480, %v464
        %498 = vst.msk [vmem:[%s280 + $0x8] sm:$0xff] %vm480, %v465
        %499 = vst.msk [vmem:[%s280 + $0x10] sm:$0xff] %vm480, %v466
        %500 = vst.msk [vmem:[%s280 + $0x18] sm:$0xff] %vm480, %v467
        %501 = vst.msk [vmem:[%s280 + $0x20] sm:$0xff] %vm480, %v468
        %502 = vst.msk [vmem:[%s280 + $0x28] sm:$0xff] %vm480, %v469
        %503 = vst.msk [vmem:[%s280 + $0x30] sm:$0xff] %vm480, %v470
        %504 = vst.msk [vmem:[%s280 + $0x38] sm:$0xff] %vm480, %v471
        %505 = vst.msk [vmem:[%s280 + $0x40] sm:$0xff] %vm480, %v472
        %506 = vst.msk [vmem:[%s280 + $0x48] sm:$0xff] %vm480, %v473
        %507 = vst.msk [vmem:[%s280 + $0x50] sm:$0xff] %vm480, %v474
        %508 = vst.msk [vmem:[%s280 + $0x58] sm:$0xff] %vm480, %v475
        %509 = vst.msk [vmem:[%s280 + $0x60] sm:$0xff] %vm480, %v476
        %510 = vst.msk [vmem:[%s280 + $0x68] sm:$0xff] %vm480, %v477
        %511 = vst.msk [vmem:[%s280 + $0x70] sm:$0xff] %vm480, %v478
        %512 = vst.msk [vmem:[%s280 + $0x78] sm:$0xff] %vm480, %v479
        %v513 = vmul.f32 %v288, %v304
        %v514 = vmul.f32 %v289, %v305
        %v515 = vmul.f32 %v290, %v306
        %v516 = vmul.f32 %v291, %v307
        %v517 = vmul.f32 %v292, %v308
        %v518 = vmul.f32 %v293, %v309
        %v519 = vmul.f32 %v294, %v310
        %v520 = vmul.f32 %v295, %v311
        %v521 = vmul.f32 %v296, %v312
        %v522 = vmul.f32 %v297, %v313
        %v523 = vmul.f32 %v298, %v314
        %v524 = vmul.f32 %v299, %v315
        %v525 = vmul.f32 %v300, %v316
        %v526 = vmul.f32 %v301, %v317
        %v527 = vmul.f32 %v302, %v318
        %v528 = vmul.f32 %v303, %v319
        %529 = vadd.xlane.f32.xlu0 %v513
        %v530 = vpop.xlane.xlu0 %529
        %531 = vadd.xlane.f32.xlu0 %v514
        %v532 = vpop.xlane.xlu0 %531
        %533 = vadd.xlane.f32.xlu0 %v515
        %v534 = vpop.xlane.xlu0 %533
        %535 = vadd.xlane.f32.xlu0 %v516
        %v536 = vpop.xlane.xlu0 %535
        %537 = vadd.xlane.f32.xlu0 %v517
        %v538 = vpop.xlane.xlu0 %537
        %539 = vadd.xlane.f32.xlu0 %v518
        %v540 = vpop.xlane.xlu0 %539
        %541 = vadd.xlane.f32.xlu0 %v519
        %v542 = vpop.xlane.xlu0 %541
        %543 = vadd.xlane.f32.xlu0 %v520
        %v544 = vpop.xlane.xlu0 %543
        %545 = vadd.xlane.f32.xlu0 %v521
        %v546 = vpop.xlane.xlu0 %545
        %547 = vadd.xlane.f32.xlu0 %v522
        %v548 = vpop.xlane.xlu0 %547
        %549 = vadd.xlane.f32.xlu0 %v523
        %v550 = vpop.xlane.xlu0 %549
        %551 = vadd.xlane.f32.xlu0 %v524
        %v552 = vpop.xlane.xlu0 %551
        %553 = vadd.xlane.f32.xlu0 %v525
        %v554 = vpop.xlane.xlu0 %553
        %555 = vadd.xlane.f32.xlu0 %v526
        %v556 = vpop.xlane.xlu0 %555
        %557 = vadd.xlane.f32.xlu0 %v527
        %v558 = vpop.xlane.xlu0 %557
        %559 = vadd.xlane.f32.xlu0 %v528
        %v560 = vpop.xlane.xlu0 %559
        %v561 = vmul.f32 %v530, %v384
        %v562 = vmul.f32 %v532, %v385
        %v563 = vmul.f32 %v534, %v386
        %v564 = vmul.f32 %v536, %v387
        %v565 = vmul.f32 %v538, %v388
        %v566 = vmul.f32 %v540, %v389
        %v567 = vmul.f32 %v542, %v390
        %v568 = vmul.f32 %v544, %v391
        %v569 = vmul.f32 %v546, %v392
        %v570 = vmul.f32 %v548, %v393
        %v571 = vmul.f32 %v550, %v394
        %v572 = vmul.f32 %v552, %v395
        %v573 = vmul.f32 %v554, %v396
        %v574 = vmul.f32 %v556, %v397
        %v575 = vmul.f32 %v558, %v398
        %v576 = vmul.f32 %v560, %v399
        %v577 = vmul.f32 %v561, %v464
        %v578 = vmul.f32 %v562, %v465
        %v579 = vmul.f32 %v563, %v466
        %v580 = vmul.f32 %v564, %v467
        %v581 = vmul.f32 %v565, %v468
        %v582 = vmul.f32 %v566, %v469
        %v583 = vmul.f32 %v567, %v470
        %v584 = vmul.f32 %v568, %v471
        %v585 = vmul.f32 %v569, %v472
        %v586 = vmul.f32 %v570, %v473
        %v587 = vmul.f32 %v571, %v474
        %v588 = vmul.f32 %v572, %v475
        %v589 = vmul.f32 %v573, %v476
        %v590 = vmul.f32 %v574, %v477
        %v591 = vmul.f32 %v575, %v478
        %v592 = vmul.f32 %v576, %v479
        %593 = vst.msk [vmem:[%s286] sm:$0xff] %vm480, %v577
        %594 = vst.msk [vmem:[%s286 + $0x8] sm:$0xff] %vm480, %v578
        %595 = vst.msk [vmem:[%s286 + $0x10] sm:$0xff] %vm480, %v579
        %596 = vst.msk [vmem:[%s286 + $0x18] sm:$0xff] %vm480, %v580
        %597 = vst.msk [vmem:[%s286 + $0x20] sm:$0xff] %vm480, %v581
        %598 = vst.msk [vmem:[%s286 + $0x28] sm:$0xff] %vm480, %v582
        %599 = vst.msk [vmem:[%s286 + $0x30] sm:$0xff] %vm480, %v583
        %600 = vst.msk [vmem:[%s286 + $0x38] sm:$0xff] %vm480, %v584
        %601 = vst.msk [vmem:[%s286 + $0x40] sm:$0xff] %vm480, %v585
        %602 = vst.msk [vmem:[%s286 + $0x48] sm:$0xff] %vm480, %v586
        %603 = vst.msk [vmem:[%s286 + $0x50] sm:$0xff] %vm480, %v587
        %604 = vst.msk [vmem:[%s286 + $0x58] sm:$0xff] %vm480, %v588
        %605 = vst.msk [vmem:[%s286 + $0x60] sm:$0xff] %vm480, %v589
        %606 = vst.msk [vmem:[%s286 + $0x68] sm:$0xff] %vm480, %v590
        %607 = vst.msk [vmem:[%s286 + $0x70] sm:$0xff] %vm480, %v591
        %608 = vst.msk [vmem:[%s286 + $0x78] sm:$0xff] %vm480, %v592
        %s609 = smul.u32 16, %s22
        %p610 = scmp.lt.s32.totalorder %s609, 31
        %s611 = scalar_select %p610, %s609, 31
        %s612 = smul.addr %s611, 8
        %s613 = scalar_lea.vmem %s2, %s612
        %s614 = smul.u32 16, %s22
        %p615 = scmp.lt.s32.totalorder %s614, 31
        %s616 = scalar_select %p615, %s614, 31
        %s617 = smul.addr %s616, 8
        %s618 = scalar_lea.vmem %s3, %s617
        %s619 = smul.u32 16, %s22
        %p620 = scmp.lt.s32.totalorder %s619, 31
        %s621 = scalar_select %p620, %s619, 31
        %s622 = smul.addr %s621, 8
        %s623 = scalar_lea.vmem %s4, %s622
        // Predicated region
        $region37: #{tpu_custom_call.1} parent=27 // pred_check
          %p624 = pneg %p92
        $region38: #{tpu_custom_call.1} parent=27 // pred_check_branch
          %626 = sbr.rel (%p624) target = $region40
        $region39: #{tpu_custom_call.1} parent=27 // pred_region
          %s627 = smul.u32 16, %s22
        $region40: #{tpu_custom_call.1} parent=27 // pred_fallthru
          _
        // Predicated region
        $region41: #{tpu_custom_call.1} parent=27 // pred_check
          %p628 = pneg %p118
        $region42: #{tpu_custom_call.1} parent=27 // pred_check_branch
          %630 = sbr.rel (%p628) target = $region44
        $region43: #{tpu_custom_call.1} parent=27 // pred_region
          %s631 = smul.u32 16, %s22
        $region44: #{tpu_custom_call.1} parent=27 // pred_fallthru
          _
        // Predicated region
        $region45: #{tpu_custom_call.1} parent=27 // pred_check
          %p632 = pneg %p144
        $region46: #{tpu_custom_call.1} parent=27 // pred_check_branch
          %634 = sbr.rel (%p632) target = $region48
        $region47: #{tpu_custom_call.1} parent=27 // pred_region
          %s635 = smul.u32 16, %s22
        $region48: #{tpu_custom_call.1} parent=27 // pred_fallthru
          _
      $region28: #{tpu_custom_call.1} parent=5 // pred_fallthru
        _
      %p636 = scmp.le.s32.totalorder 2, %s17
      // Predicated region
      $region49: #{tpu_custom_call.1} parent=5 // pred_check
        %p637 = pneg %p636
      $region50: #{tpu_custom_call.1} parent=5 // pred_check_branch
        %639 = sbr.rel (%p637) target = $region52
      $region51: #{tpu_custom_call.1} parent=5 // pred_region
        %s640 = ssub.s32 %s17, 2
        // Predicated region
        $region53: #{tpu_custom_call.1} parent=51 // pred_check
          %p641 = pneg %p98
        $region54: #{tpu_custom_call.1} parent=51 // pred_check_branch
          %643 = sbr.rel (%p641) target = $region56
        $region55: #{tpu_custom_call.1} parent=51 // pred_region
          %s644 = smul.u32 16, %s23
          %p645 = scmp.lt.s32.totalorder %s644, 31
          %s646 = scalar_select %p645, %s644, 31
          %s647 = smul.addr %s646, 8
          %s648 = scalar_lea.vmem %s2, %s647
        $region56: #{tpu_custom_call.1} parent=51 // pred_fallthru
          _
        // Predicated region
        $region57: #{tpu_custom_call.1} parent=51 // pred_check
          %p649 = pneg %p124
        $region58: #{tpu_custom_call.1} parent=51 // pred_check_branch
          %651 = sbr.rel (%p649) target = $region60
        $region59: #{tpu_custom_call.1} parent=51 // pred_region
          %s652 = smul.u32 16, %s23
          %p653 = scmp.lt.s32.totalorder %s652, 31
          %s654 = scalar_select %p653, %s652, 31
          %s655 = smul.addr %s654, 8
          %s656 = scalar_lea.vmem %s3, %s655
        $region60: #{tpu_custom_call.1} parent=51 // pred_fallthru
          _
        // Predicated region
        $region61: #{tpu_custom_call.1} parent=51 // pred_check
          %p657 = pneg %p150
        $region62: #{tpu_custom_call.1} parent=51 // pred_check_branch
          %659 = sbr.rel (%p657) target = $region64
        $region63: #{tpu_custom_call.1} parent=51 // pred_region
          %s660 = smul.u32 16, %s23
          %p661 = scmp.lt.s32.totalorder %s660, 31
          %s662 = scalar_select %p661, %s660, 31
          %s663 = smul.addr %s662, 8
          %s664 = scalar_lea.vmem %s4, %s663
        $region64: #{tpu_custom_call.1} parent=51 // pred_fallthru
          _
      $region52: #{tpu_custom_call.1} parent=5 // pred_fallthru
        _
    $region6: #{tpu_custom_call.1} parent=1 // loop_footer
      %s21 = sadd.s32 1, %s17
    $region7: #{tpu_custom_call.1} parent=1 // loop_footer_branch
      %16 = sbr.rel target = $region3
    $region8: #{tpu_custom_call.1} parent=1 // loop_exit
      _
    %665 = vsyncpa [#allocation3], 1
    %s666 = scalar_lea.sflag [#allocation3], 1
    %667 = vsyncpa %s666, 1
    %668 = vsyncpa [#allocation5], 1
    %s669 = scalar_lea.sflag [#allocation5], 1
    %670 = vsyncpa %s669, 1

</llo_original>
